<compile_context>
chip_gen: v7x
topology: tpu7x:2x2x1
jax: 0.10.0
libtpu: 0.0.40
codegen_flags: <defaults>
</compile_context>

<pallas_src>
import jax
import jax.numpy as jnp
from jax import lax
from jax.experimental import pallas as pl
from jax.experimental.pallas import tpu as pltpu


def _lstm_ha_kernel(x_ref, wih_ref, whh_ref, b_ref, out_ref):
    """Single invocation: full LSTM recurrence + fused attention epilogue.

    x_ref  : (T*B, F)  time-major, flattened inputs (row t*B+b is x[b, t, :])
    wih_ref: (F, 4H)   W_ih^T
    whh_ref: (H, 4H)   W_hh^T
    b_ref  : (1, 4H)   b_ih + b_hh
    out_ref: (B, H)    attention output (== h[0] of the PyTorch module)
    """
    B, H = out_ref.shape
    T = x_ref.shape[0] // B

    # Hoisted input projection: one (T*B, F) @ (F, 4H) MXU op + bias, computed
    # once at kernel entry (off the serial critical path).
    xw = jnp.dot(x_ref[...], wih_ref[...],
                 preferred_element_type=jnp.float32) + b_ref[...]   # (T*B, 4H)
    whh = whh_ref[...]                                              # (H, 4H)

    h = jnp.zeros((B, H), jnp.float32)
    c = jnp.zeros((B, H), jnp.float32)

    # T is small & static -> fully unrolled straight-line recurrence; only the
    # h @ W_hh matmul sits on the per-step serial dependency chain.
    for t in range(T):
        gates = xw[t * B:(t + 1) * B, :] + jnp.dot(
            h, whh, preferred_element_type=jnp.float32)   # (B, 4H); i, f, g, o
        i_g = jax.nn.sigmoid(gates[:, 0 * H:1 * H])
        f_g = jax.nn.sigmoid(gates[:, 1 * H:2 * H])
        g_g = jnp.tanh(gates[:, 2 * H:3 * H])
        o_g = jax.nn.sigmoid(gates[:, 3 * H:4 * H])
        c = f_g * c + i_g * g_g
        h = o_g * jnp.tanh(c)

    # Dot-product self-attention over h_n (queries = keys = values = h_n).
    # Contract the last dims directly so no transpose is materialized.
    scores = lax.dot_general(h, h, (((1,), (1,)), ((), ())),
                             preferred_element_type=jnp.float32)    # (B, B)
    scores = scores * (1.0 / jnp.sqrt(jnp.float32(H)))
    m = jnp.max(scores, axis=-1, keepdims=True)
    e = jnp.exp(scores - m)
    p = e * pl.reciprocal(jnp.sum(e, axis=-1, keepdims=True), approx=False)
    out_ref[...] = jnp.dot(p, h, preferred_element_type=jnp.float32
                           ).astype(out_ref.dtype)


def prepare_weights(w_ih, w_hh, b_ih, b_hh):
    """One-time weight prep (hoisted out of the per-call forward path).

    w_ih: (4H, F), w_hh: (4H, H), b_ih/b_hh: (4H,)  -- PyTorch nn.LSTM layout.
    """
    wih_t = jnp.transpose(w_ih)                      # (F, 4H)
    whh_t = jnp.transpose(w_hh)                      # (H, 4H)
    bias = (b_ih + b_hh).reshape(1, -1)              # (1, 4H)
    return wih_t, whh_t, bias


def lstm_ha_forward(x_btf, wih_t, whh_t, bias):
    """x_btf: (B, T, F) float32, batch_first like the PyTorch module.

    wih_t/whh_t/bias come from prepare_weights().  Returns (B, H) float32.
    """
    B, T, F = x_btf.shape
    H = whh_t.shape[0]

    # Time-major then flatten (T, B) so the input projection is one matmul.
    x_flat = jnp.transpose(x_btf, (1, 0, 2)).reshape(T * B, F)

    return pl.pallas_call(
        _lstm_ha_kernel,
        out_shape=jax.ShapeDtypeStruct((B, H), jnp.float32),
        in_specs=[
            pl.BlockSpec(memory_space=pltpu.MemorySpace.VMEM),   # x (T*B, F)
            pl.BlockSpec(memory_space=pltpu.MemorySpace.VMEM),   # W_ih^T
            pl.BlockSpec(memory_space=pltpu.MemorySpace.VMEM),   # W_hh^T
            pl.BlockSpec(memory_space=pltpu.MemorySpace.VMEM),   # bias
        ],
        out_specs=pl.BlockSpec(memory_space=pltpu.MemorySpace.VMEM),
    )(x_flat, wih_t, whh_t, bias)


def lstm_ha_reference(x_btf, w_ih, w_hh, b_ih, b_hh):
    """Pure-JAX reference with identical semantics (for verification)."""
    B, T, F = x_btf.shape
    H = w_hh.shape[1]
    bias = b_ih + b_hh

    def step(carry, x_t):
        h, c = carry
        gates = x_t @ w_ih.T + h @ w_hh.T + bias
        i = jax.nn.sigmoid(gates[:, 0 * H:1 * H])
        f = jax.nn.sigmoid(gates[:, 1 * H:2 * H])
        g = jnp.tanh(gates[:, 2 * H:3 * H])
        o = jax.nn.sigmoid(gates[:, 3 * H:4 * H])
        c = f * c + i * g
        h = o * jnp.tanh(c)
        return (h, c), None

    h0 = jnp.zeros((B, H), jnp.float32)
    c0 = jnp.zeros((B, H), jnp.float32)
    (h_n, _), _ = lax.scan(step, (h0, c0), jnp.transpose(x_btf, (1, 0, 2)))

    scores = (h_n @ h_n.T) / jnp.sqrt(jnp.float32(H))
    p = jax.nn.softmax(scores, axis=-1)            # dropout == identity (eval)
    return p @ h_n


if __name__ == "__main__":
    # Small shapes consistent with the module:
    #   batch (num_stocks) = 4, seq (window_len) = 8,
    #   in_features = 8, output_dim (LSTM hidden) = 32.
    B, T, F, H = 4, 8, 8, 32

    key = jax.random.PRNGKey(0)
    kx, k1, k2, k3, k4 = jax.random.split(key, 5)

    x = jax.random.normal(kx, (B, T, F), dtype=jnp.float32)

    # PyTorch nn.LSTM default init: U(-1/sqrt(H), 1/sqrt(H)), deterministic here.
    k = 1.0 / jnp.sqrt(jnp.float32(H))
    w_ih = jax.random.uniform(k1, (4 * H, F), jnp.float32, -k, k)
    w_hh = jax.random.uniform(k2, (4 * H, H), jnp.float32, -k, k)
    b_ih = jax.random.uniform(k3, (4 * H,), jnp.float32, -k, k)
    b_hh = jax.random.uniform(k4, (4 * H,), jnp.float32, -k, k)

    # Weight prep happens once, outside the jitted steady-state path.
    wih_t, whh_t, bias = jax.block_until_ready(
        prepare_weights(w_ih, w_hh, b_ih, b_hh))

    fwd = jax.jit(lstm_ha_forward)
    out = jax.block_until_ready(fwd(x, wih_t, whh_t, bias))
    ref = jax.block_until_ready(
        jax.jit(lstm_ha_reference)(x, w_ih, w_hh, b_ih, b_hh))

    assert out.shape == (B, H), out.shape
    assert jnp.allclose(out, ref, atol=1e-5, rtol=1e-5), (
        float(jnp.max(jnp.abs(out - ref))))

    print("KERNEL_OK")
</pallas_src>

<mosaic_0001>
module attributes {stable_mosaic.version = 11 : i64} {
  func.func @_lstm_ha_kernel(%arg0: memref<32x8xf32, #tpu.memory_space<vmem>>, %arg1: memref<8x128xf32, #tpu.memory_space<vmem>>, %arg2: memref<32x128xf32, #tpu.memory_space<vmem>>, %arg3: memref<1x128xf32, #tpu.memory_space<vmem>>, %arg4: memref<4x32xf32, #tpu.memory_space<vmem>>) attributes {dimension_semantics = [], scalar_prefetch = 0 : i64, scratch_operands = 0 : i64, tpu.core_type = #tpu.core_type<tc>} {
    %c0 = arith.constant 0 : index
    %c0_0 = arith.constant 0 : index
    %0 = vector.load %arg0[%c0, %c0_0] : memref<32x8xf32, #tpu.memory_space<vmem>>, vector<32x8xf32>
    %c0_1 = arith.constant 0 : index
    %c0_2 = arith.constant 0 : index
    %1 = vector.load %arg1[%c0_1, %c0_2] : memref<8x128xf32, #tpu.memory_space<vmem>>, vector<8x128xf32>
    %cst = arith.constant dense<0.000000e+00> : vector<32x128xf32>
    %2 = tpu.matmul %0, %1, %cst {dimension_numbers = #tpu.dot_dimension_numbers<[1], [0], [0], [1], [0, 0, 1, 1], [], []>} : vector<32x8xf32>, vector<8x128xf32>, vector<32x128xf32> -> vector<32x128xf32>
    %c0_3 = arith.constant 0 : index
    %c0_4 = arith.constant 0 : index
    %3 = vector.load %arg3[%c0_3, %c0_4] : memref<1x128xf32, #tpu.memory_space<vmem>>, vector<1x128xf32>
    %4 = vector.broadcast %3 : vector<1x128xf32> to vector<32x128xf32>
    %5 = arith.addf %2, %4 : vector<32x128xf32>
    %c0_5 = arith.constant 0 : index
    %c0_6 = arith.constant 0 : index
    %6 = vector.load %arg2[%c0_5, %c0_6] : memref<32x128xf32, #tpu.memory_space<vmem>>, vector<32x128xf32>
    %cst_7 = arith.constant 0.000000e+00 : f32
    %7 = vector.broadcast %cst_7 : f32 to vector<4x32xf32>
    %cst_8 = arith.constant 0.000000e+00 : f32
    %8 = vector.broadcast %cst_8 : f32 to vector<4x32xf32>
    %9 = vector.extract_strided_slice %5 {offsets = [0, 0], sizes = [4, 128], strides = [1, 1]} : vector<32x128xf32> to vector<4x128xf32>
    %cst_9 = arith.constant dense<0.000000e+00> : vector<4x128xf32>
    %10 = tpu.matmul %7, %6, %cst_9 {dimension_numbers = #tpu.dot_dimension_numbers<[1], [0], [0], [1], [0, 0, 1, 1], [], []>} : vector<4x32xf32>, vector<32x128xf32>, vector<4x128xf32> -> vector<4x128xf32>
    %11 = arith.addf %9, %10 : vector<4x128xf32>
    %12 = vector.extract_strided_slice %11 {offsets = [0, 0], sizes = [4, 32], strides = [1, 1]} : vector<4x128xf32> to vector<4x32xf32>
    %13 = arith.negf %12 : vector<4x32xf32>
    %14 = math.exp %13 : vector<4x32xf32>
    %cst_10 = arith.constant 1.000000e+00 : f32
    %15 = vector.broadcast %cst_10 : f32 to vector<4x32xf32>
    %16 = arith.addf %15, %14 : vector<4x32xf32>
    %17 = arith.divf %15, %16 : vector<4x32xf32>
    %18 = vector.extract_strided_slice %11 {offsets = [0, 32], sizes = [4, 32], strides = [1, 1]} : vector<4x128xf32> to vector<4x32xf32>
    %19 = arith.negf %18 : vector<4x32xf32>
    %20 = math.exp %19 : vector<4x32xf32>
    %cst_11 = arith.constant 1.000000e+00 : f32
    %21 = vector.broadcast %cst_11 : f32 to vector<4x32xf32>
    %22 = arith.addf %21, %20 : vector<4x32xf32>
    %23 = arith.divf %21, %22 : vector<4x32xf32>
    %24 = vector.extract_strided_slice %11 {offsets = [0, 64], sizes = [4, 32], strides = [1, 1]} : vector<4x128xf32> to vector<4x32xf32>
    %25 = math.tanh %24 : vector<4x32xf32>
    %26 = vector.extract_strided_slice %11 {offsets = [0, 96], sizes = [4, 32], strides = [1, 1]} : vector<4x128xf32> to vector<4x32xf32>
    %27 = arith.negf %26 : vector<4x32xf32>
    %28 = math.exp %27 : vector<4x32xf32>
    %cst_12 = arith.constant 1.000000e+00 : f32
    %29 = vector.broadcast %cst_12 : f32 to vector<4x32xf32>
    %30 = arith.addf %29, %28 : vector<4x32xf32>
    %31 = arith.divf %29, %30 : vector<4x32xf32>
    %32 = arith.mulf %23, %8 : vector<4x32xf32>
    %33 = arith.mulf %17, %25 : vector<4x32xf32>
    %34 = arith.addf %32, %33 : vector<4x32xf32>
    %35 = math.tanh %34 : vector<4x32xf32>
    %36 = arith.mulf %31, %35 : vector<4x32xf32>
    %37 = vector.extract_strided_slice %5 {offsets = [4, 0], sizes = [4, 128], strides = [1, 1]} : vector<32x128xf32> to vector<4x128xf32>
    %cst_13 = arith.constant dense<0.000000e+00> : vector<4x128xf32>
    %38 = tpu.matmul %36, %6, %cst_13 {dimension_numbers = #tpu.dot_dimension_numbers<[1], [0], [0], [1], [0, 0, 1, 1], [], []>} : vector<4x32xf32>, vector<32x128xf32>, vector<4x128xf32> -> vector<4x128xf32>
    %39 = arith.addf %37, %38 : vector<4x128xf32>
    %40 = vector.extract_strided_slice %39 {offsets = [0, 0], sizes = [4, 32], strides = [1, 1]} : vector<4x128xf32> to vector<4x32xf32>
    %41 = arith.negf %40 : vector<4x32xf32>
    %42 = math.exp %41 : vector<4x32xf32>
    %cst_14 = arith.constant 1.000000e+00 : f32
    %43 = vector.broadcast %cst_14 : f32 to vector<4x32xf32>
    %44 = arith.addf %43, %42 : vector<4x32xf32>
    %45 = arith.divf %43, %44 : vector<4x32xf32>
    %46 = vector.extract_strided_slice %39 {offsets = [0, 32], sizes = [4, 32], strides = [1, 1]} : vector<4x128xf32> to vector<4x32xf32>
    %47 = arith.negf %46 : vector<4x32xf32>
    %48 = math.exp %47 : vector<4x32xf32>
    %cst_15 = arith.constant 1.000000e+00 : f32
    %49 = vector.broadcast %cst_15 : f32 to vector<4x32xf32>
    %50 = arith.addf %49, %48 : vector<4x32xf32>
    %51 = arith.divf %49, %50 : vector<4x32xf32>
    %52 = vector.extract_strided_slice %39 {offsets = [0, 64], sizes = [4, 32], strides = [1, 1]} : vector<4x128xf32> to vector<4x32xf32>
    %53 = math.tanh %52 : vector<4x32xf32>
    %54 = vector.extract_strided_slice %39 {offsets = [0, 96], sizes = [4, 32], strides = [1, 1]} : vector<4x128xf32> to vector<4x32xf32>
    %55 = arith.negf %54 : vector<4x32xf32>
    %56 = math.exp %55 : vector<4x32xf32>
    %cst_16 = arith.constant 1.000000e+00 : f32
    %57 = vector.broadcast %cst_16 : f32 to vector<4x32xf32>
    %58 = arith.addf %57, %56 : vector<4x32xf32>
    %59 = arith.divf %57, %58 : vector<4x32xf32>
    %60 = arith.mulf %51, %34 : vector<4x32xf32>
    %61 = arith.mulf %45, %53 : vector<4x32xf32>
    %62 = arith.addf %60, %61 : vector<4x32xf32>
    %63 = math.tanh %62 : vector<4x32xf32>
    %64 = arith.mulf %59, %63 : vector<4x32xf32>
    %65 = vector.extract_strided_slice %5 {offsets = [8, 0], sizes = [4, 128], strides = [1, 1]} : vector<32x128xf32> to vector<4x128xf32>
    %cst_17 = arith.constant dense<0.000000e+00> : vector<4x128xf32>
    %66 = tpu.matmul %64, %6, %cst_17 {dimension_numbers = #tpu.dot_dimension_numbers<[1], [0], [0], [1], [0, 0, 1, 1], [], []>} : vector<4x32xf32>, vector<32x128xf32>, vector<4x128xf32> -> vector<4x128xf32>
    %67 = arith.addf %65, %66 : vector<4x128xf32>
    %68 = vector.extract_strided_slice %67 {offsets = [0, 0], sizes = [4, 32], strides = [1, 1]} : vector<4x128xf32> to vector<4x32xf32>
    %69 = arith.negf %68 : vector<4x32xf32>
    %70 = math.exp %69 : vector<4x32xf32>
    %cst_18 = arith.constant 1.000000e+00 : f32
    %71 = vector.broadcast %cst_18 : f32 to vector<4x32xf32>
    %72 = arith.addf %71, %70 : vector<4x32xf32>
    %73 = arith.divf %71, %72 : vector<4x32xf32>
    %74 = vector.extract_strided_slice %67 {offsets = [0, 32], sizes = [4, 32], strides = [1, 1]} : vector<4x128xf32> to vector<4x32xf32>
    %75 = arith.negf %74 : vector<4x32xf32>
    %76 = math.exp %75 : vector<4x32xf32>
    %cst_19 = arith.constant 1.000000e+00 : f32
    %77 = vector.broadcast %cst_19 : f32 to vector<4x32xf32>
    %78 = arith.addf %77, %76 : vector<4x32xf32>
    %79 = arith.divf %77, %78 : vector<4x32xf32>
    %80 = vector.extract_strided_slice %67 {offsets = [0, 64], sizes = [4, 32], strides = [1, 1]} : vector<4x128xf32> to vector<4x32xf32>
    %81 = math.tanh %80 : vector<4x32xf32>
    %82 = vector.extract_strided_slice %67 {offsets = [0, 96], sizes = [4, 32], strides = [1, 1]} : vector<4x128xf32> to vector<4x32xf32>
    %83 = arith.negf %82 : vector<4x32xf32>
    %84 = math.exp %83 : vector<4x32xf32>
    %cst_20 = arith.constant 1.000000e+00 : f32
    %85 = vector.broadcast %cst_20 : f32 to vector<4x32xf32>
    %86 = arith.addf %85, %84 : vector<4x32xf32>
    %87 = arith.divf %85, %86 : vector<4x32xf32>
    %88 = arith.mulf %79, %62 : vector<4x32xf32>
    %89 = arith.mulf %73, %81 : vector<4x32xf32>
    %90 = arith.addf %88, %89 : vector<4x32xf32>
    %91 = math.tanh %90 : vector<4x32xf32>
    %92 = arith.mulf %87, %91 : vector<4x32xf32>
    %93 = vector.extract_strided_slice %5 {offsets = [12, 0], sizes = [4, 128], strides = [1, 1]} : vector<32x128xf32> to vector<4x128xf32>
    %cst_21 = arith.constant dense<0.000000e+00> : vector<4x128xf32>
    %94 = tpu.matmul %92, %6, %cst_21 {dimension_numbers = #tpu.dot_dimension_numbers<[1], [0], [0], [1], [0, 0, 1, 1], [], []>} : vector<4x32xf32>, vector<32x128xf32>, vector<4x128xf32> -> vector<4x128xf32>
    %95 = arith.addf %93, %94 : vector<4x128xf32>
    %96 = vector.extract_strided_slice %95 {offsets = [0, 0], sizes = [4, 32], strides = [1, 1]} : vector<4x128xf32> to vector<4x32xf32>
    %97 = arith.negf %96 : vector<4x32xf32>
    %98 = math.exp %97 : vector<4x32xf32>
    %cst_22 = arith.constant 1.000000e+00 : f32
    %99 = vector.broadcast %cst_22 : f32 to vector<4x32xf32>
    %100 = arith.addf %99, %98 : vector<4x32xf32>
    %101 = arith.divf %99, %100 : vector<4x32xf32>
    %102 = vector.extract_strided_slice %95 {offsets = [0, 32], sizes = [4, 32], strides = [1, 1]} : vector<4x128xf32> to vector<4x32xf32>
    %103 = arith.negf %102 : vector<4x32xf32>
    %104 = math.exp %103 : vector<4x32xf32>
    %cst_23 = arith.constant 1.000000e+00 : f32
    %105 = vector.broadcast %cst_23 : f32 to vector<4x32xf32>
    %106 = arith.addf %105, %104 : vector<4x32xf32>
    %107 = arith.divf %105, %106 : vector<4x32xf32>
    %108 = vector.extract_strided_slice %95 {offsets = [0, 64], sizes = [4, 32], strides = [1, 1]} : vector<4x128xf32> to vector<4x32xf32>
    %109 = math.tanh %108 : vector<4x32xf32>
    %110 = vector.extract_strided_slice %95 {offsets = [0, 96], sizes = [4, 32], strides = [1, 1]} : vector<4x128xf32> to vector<4x32xf32>
    %111 = arith.negf %110 : vector<4x32xf32>
    %112 = math.exp %111 : vector<4x32xf32>
    %cst_24 = arith.constant 1.000000e+00 : f32
    %113 = vector.broadcast %cst_24 : f32 to vector<4x32xf32>
    %114 = arith.addf %113, %112 : vector<4x32xf32>
    %115 = arith.divf %113, %114 : vector<4x32xf32>
    %116 = arith.mulf %107, %90 : vector<4x32xf32>
    %117 = arith.mulf %101, %109 : vector<4x32xf32>
    %118 = arith.addf %116, %117 : vector<4x32xf32>
    %119 = math.tanh %118 : vector<4x32xf32>
    %120 = arith.mulf %115, %119 : vector<4x32xf32>
    %121 = vector.extract_strided_slice %5 {offsets = [16, 0], sizes = [4, 128], strides = [1, 1]} : vector<32x128xf32> to vector<4x128xf32>
    %cst_25 = arith.constant dense<0.000000e+00> : vector<4x128xf32>
    %122 = tpu.matmul %120, %6, %cst_25 {dimension_numbers = #tpu.dot_dimension_numbers<[1], [0], [0], [1], [0, 0, 1, 1], [], []>} : vector<4x32xf32>, vector<32x128xf32>, vector<4x128xf32> -> vector<4x128xf32>
    %123 = arith.addf %121, %122 : vector<4x128xf32>
    %124 = vector.extract_strided_slice %123 {offsets = [0, 0], sizes = [4, 32], strides = [1, 1]} : vector<4x128xf32> to vector<4x32xf32>
    %125 = arith.negf %124 : vector<4x32xf32>
    %126 = math.exp %125 : vector<4x32xf32>
    %cst_26 = arith.constant 1.000000e+00 : f32
    %127 = vector.broadcast %cst_26 : f32 to vector<4x32xf32>
    %128 = arith.addf %127, %126 : vector<4x32xf32>
    %129 = arith.divf %127, %128 : vector<4x32xf32>
    %130 = vector.extract_strided_slice %123 {offsets = [0, 32], sizes = [4, 32], strides = [1, 1]} : vector<4x128xf32> to vector<4x32xf32>
    %131 = arith.negf %130 : vector<4x32xf32>
    %132 = math.exp %131 : vector<4x32xf32>
    %cst_27 = arith.constant 1.000000e+00 : f32
    %133 = vector.broadcast %cst_27 : f32 to vector<4x32xf32>
    %134 = arith.addf %133, %132 : vector<4x32xf32>
    %135 = arith.divf %133, %134 : vector<4x32xf32>
    %136 = vector.extract_strided_slice %123 {offsets = [0, 64], sizes = [4, 32], strides = [1, 1]} : vector<4x128xf32> to vector<4x32xf32>
    %137 = math.tanh %136 : vector<4x32xf32>
    %138 = vector.extract_strided_slice %123 {offsets = [0, 96], sizes = [4, 32], strides = [1, 1]} : vector<4x128xf32> to vector<4x32xf32>
    %139 = arith.negf %138 : vector<4x32xf32>
    %140 = math.exp %139 : vector<4x32xf32>
    %cst_28 = arith.constant 1.000000e+00 : f32
    %141 = vector.broadcast %cst_28 : f32 to vector<4x32xf32>
    %142 = arith.addf %141, %140 : vector<4x32xf32>
    %143 = arith.divf %141, %142 : vector<4x32xf32>
    %144 = arith.mulf %135, %118 : vector<4x32xf32>
    %145 = arith.mulf %129, %137 : vector<4x32xf32>
    %146 = arith.addf %144, %145 : vector<4x32xf32>
    %147 = math.tanh %146 : vector<4x32xf32>
    %148 = arith.mulf %143, %147 : vector<4x32xf32>
    %149 = vector.extract_strided_slice %5 {offsets = [20, 0], sizes = [4, 128], strides = [1, 1]} : vector<32x128xf32> to vector<4x128xf32>
    %cst_29 = arith.constant dense<0.000000e+00> : vector<4x128xf32>
    %150 = tpu.matmul %148, %6, %cst_29 {dimension_numbers = #tpu.dot_dimension_numbers<[1], [0], [0], [1], [0, 0, 1, 1], [], []>} : vector<4x32xf32>, vector<32x128xf32>, vector<4x128xf32> -> vector<4x128xf32>
    %151 = arith.addf %149, %150 : vector<4x128xf32>
    %152 = vector.extract_strided_slice %151 {offsets = [0, 0], sizes = [4, 32], strides = [1, 1]} : vector<4x128xf32> to vector<4x32xf32>
    %153 = arith.negf %152 : vector<4x32xf32>
    %154 = math.exp %153 : vector<4x32xf32>
    %cst_30 = arith.constant 1.000000e+00 : f32
    %155 = vector.broadcast %cst_30 : f32 to vector<4x32xf32>
    %156 = arith.addf %155, %154 : vector<4x32xf32>
    %157 = arith.divf %155, %156 : vector<4x32xf32>
    %158 = vector.extract_strided_slice %151 {offsets = [0, 32], sizes = [4, 32], strides = [1, 1]} : vector<4x128xf32> to vector<4x32xf32>
    %159 = arith.negf %158 : vector<4x32xf32>
    %160 = math.exp %159 : vector<4x32xf32>
    %cst_31 = arith.constant 1.000000e+00 : f32
    %161 = vector.broadcast %cst_31 : f32 to vector<4x32xf32>
    %162 = arith.addf %161, %160 : vector<4x32xf32>
    %163 = arith.divf %161, %162 : vector<4x32xf32>
    %164 = vector.extract_strided_slice %151 {offsets = [0, 64], sizes = [4, 32], strides = [1, 1]} : vector<4x128xf32> to vector<4x32xf32>
    %165 = math.tanh %164 : vector<4x32xf32>
    %166 = vector.extract_strided_slice %151 {offsets = [0, 96], sizes = [4, 32], strides = [1, 1]} : vector<4x128xf32> to vector<4x32xf32>
    %167 = arith.negf %166 : vector<4x32xf32>
    %168 = math.exp %167 : vector<4x32xf32>
    %cst_32 = arith.constant 1.000000e+00 : f32
    %169 = vector.broadcast %cst_32 : f32 to vector<4x32xf32>
    %170 = arith.addf %169, %168 : vector<4x32xf32>
    %171 = arith.divf %169, %170 : vector<4x32xf32>
    %172 = arith.mulf %163, %146 : vector<4x32xf32>
    %173 = arith.mulf %157, %165 : vector<4x32xf32>
    %174 = arith.addf %172, %173 : vector<4x32xf32>
    %175 = math.tanh %174 : vector<4x32xf32>
    %176 = arith.mulf %171, %175 : vector<4x32xf32>
    %177 = vector.extract_strided_slice %5 {offsets = [24, 0], sizes = [4, 128], strides = [1, 1]} : vector<32x128xf32> to vector<4x128xf32>
    %cst_33 = arith.constant dense<0.000000e+00> : vector<4x128xf32>
    %178 = tpu.matmul %176, %6, %cst_33 {dimension_numbers = #tpu.dot_dimension_numbers<[1], [0], [0], [1], [0, 0, 1, 1], [], []>} : vector<4x32xf32>, vector<32x128xf32>, vector<4x128xf32> -> vector<4x128xf32>
    %179 = arith.addf %177, %178 : vector<4x128xf32>
    %180 = vector.extract_strided_slice %179 {offsets = [0, 0], sizes = [4, 32], strides = [1, 1]} : vector<4x128xf32> to vector<4x32xf32>
    %181 = arith.negf %180 : vector<4x32xf32>
    %182 = math.exp %181 : vector<4x32xf32>
    %cst_34 = arith.constant 1.000000e+00 : f32
    %183 = vector.broadcast %cst_34 : f32 to vector<4x32xf32>
    %184 = arith.addf %183, %182 : vector<4x32xf32>
    %185 = arith.divf %183, %184 : vector<4x32xf32>
    %186 = vector.extract_strided_slice %179 {offsets = [0, 32], sizes = [4, 32], strides = [1, 1]} : vector<4x128xf32> to vector<4x32xf32>
    %187 = arith.negf %186 : vector<4x32xf32>
    %188 = math.exp %187 : vector<4x32xf32>
    %cst_35 = arith.constant 1.000000e+00 : f32
    %189 = vector.broadcast %cst_35 : f32 to vector<4x32xf32>
    %190 = arith.addf %189, %188 : vector<4x32xf32>
    %191 = arith.divf %189, %190 : vector<4x32xf32>
    %192 = vector.extract_strided_slice %179 {offsets = [0, 64], sizes = [4, 32], strides = [1, 1]} : vector<4x128xf32> to vector<4x32xf32>
    %193 = math.tanh %192 : vector<4x32xf32>
    %194 = vector.extract_strided_slice %179 {offsets = [0, 96], sizes = [4, 32], strides = [1, 1]} : vector<4x128xf32> to vector<4x32xf32>
    %195 = arith.negf %194 : vector<4x32xf32>
    %196 = math.exp %195 : vector<4x32xf32>
    %cst_36 = arith.constant 1.000000e+00 : f32
    %197 = vector.broadcast %cst_36 : f32 to vector<4x32xf32>
    %198 = arith.addf %197, %196 : vector<4x32xf32>
    %199 = arith.divf %197, %198 : vector<4x32xf32>
    %200 = arith.mulf %191, %174 : vector<4x32xf32>
    %201 = arith.mulf %185, %193 : vector<4x32xf32>
    %202 = arith.addf %200, %201 : vector<4x32xf32>
    %203 = math.tanh %202 : vector<4x32xf32>
    %204 = arith.mulf %199, %203 : vector<4x32xf32>
    %205 = vector.extract_strided_slice %5 {offsets = [28, 0], sizes = [4, 128], strides = [1, 1]} : vector<32x128xf32> to vector<4x128xf32>
    %cst_37 = arith.constant dense<0.000000e+00> : vector<4x128xf32>
    %206 = tpu.matmul %204, %6, %cst_37 {dimension_numbers = #tpu.dot_dimension_numbers<[1], [0], [0], [1], [0, 0, 1, 1], [], []>} : vector<4x32xf32>, vector<32x128xf32>, vector<4x128xf32> -> vector<4x128xf32>
    %207 = arith.addf %205, %206 : vector<4x128xf32>
    %208 = vector.extract_strided_slice %207 {offsets = [0, 0], sizes = [4, 32], strides = [1, 1]} : vector<4x128xf32> to vector<4x32xf32>
    %209 = arith.negf %208 : vector<4x32xf32>
    %210 = math.exp %209 : vector<4x32xf32>
    %cst_38 = arith.constant 1.000000e+00 : f32
    %211 = vector.broadcast %cst_38 : f32 to vector<4x32xf32>
    %212 = arith.addf %211, %210 : vector<4x32xf32>
    %213 = arith.divf %211, %212 : vector<4x32xf32>
    %214 = vector.extract_strided_slice %207 {offsets = [0, 32], sizes = [4, 32], strides = [1, 1]} : vector<4x128xf32> to vector<4x32xf32>
    %215 = arith.negf %214 : vector<4x32xf32>
    %216 = math.exp %215 : vector<4x32xf32>
    %cst_39 = arith.constant 1.000000e+00 : f32
    %217 = vector.broadcast %cst_39 : f32 to vector<4x32xf32>
    %218 = arith.addf %217, %216 : vector<4x32xf32>
    %219 = arith.divf %217, %218 : vector<4x32xf32>
    %220 = vector.extract_strided_slice %207 {offsets = [0, 64], sizes = [4, 32], strides = [1, 1]} : vector<4x128xf32> to vector<4x32xf32>
    %221 = math.tanh %220 : vector<4x32xf32>
    %222 = vector.extract_strided_slice %207 {offsets = [0, 96], sizes = [4, 32], strides = [1, 1]} : vector<4x128xf32> to vector<4x32xf32>
    %223 = arith.negf %222 : vector<4x32xf32>
    %224 = math.exp %223 : vector<4x32xf32>
    %cst_40 = arith.constant 1.000000e+00 : f32
    %225 = vector.broadcast %cst_40 : f32 to vector<4x32xf32>
    %226 = arith.addf %225, %224 : vector<4x32xf32>
    %227 = arith.divf %225, %226 : vector<4x32xf32>
    %228 = arith.mulf %219, %202 : vector<4x32xf32>
    %229 = arith.mulf %213, %221 : vector<4x32xf32>
    %230 = arith.addf %228, %229 : vector<4x32xf32>
    %231 = math.tanh %230 : vector<4x32xf32>
    %232 = arith.mulf %227, %231 : vector<4x32xf32>
    %cst_41 = arith.constant dense<0.000000e+00> : vector<4x4xf32>
    %233 = tpu.matmul %232, %232, %cst_41 {dimension_numbers = #tpu.dot_dimension_numbers<[1], [1], [0], [0], [0, 0, 1, 0], [], []>} : vector<4x32xf32>, vector<4x32xf32>, vector<4x4xf32> -> vector<4x4xf32>
    %cst_42 = arith.constant 3.200000e+01 : f32
    %234 = math.sqrt %cst_42 : f32
    %cst_43 = arith.constant 1.000000e+00 : f32
    %235 = arith.divf %cst_43, %234 : f32
    %236 = vector.broadcast %235 : f32 to vector<4x4xf32>
    %237 = arith.mulf %233, %236 : vector<4x4xf32>
    %cst_44 = arith.constant dense<0xFF800000> : vector<4xf32>
    %238 = vector.multi_reduction <maximumf>, %237, %cst_44 [1] : vector<4x4xf32> to vector<4xf32>
    %239 = vector.shape_cast %238 : vector<4xf32> to vector<4x1xf32>
    %240 = vector.broadcast %239 : vector<4x1xf32> to vector<4x4xf32>
    %241 = arith.subf %237, %240 : vector<4x4xf32>
    %242 = math.exp %241 : vector<4x4xf32>
    %cst_45 = arith.constant dense<0.000000e+00> : vector<4xf32>
    %243 = vector.multi_reduction <add>, %242, %cst_45 [1] : vector<4x4xf32> to vector<4xf32>
    %244 = vector.shape_cast %243 : vector<4xf32> to vector<4x1xf32>
    %245 = tpu.reciprocal %244 : vector<4x1xf32> -> vector<4x1xf32>
    %246 = vector.broadcast %245 : vector<4x1xf32> to vector<4x4xf32>
    %247 = arith.mulf %242, %246 : vector<4x4xf32>
    %cst_46 = arith.constant dense<0.000000e+00> : vector<4x32xf32>
    %248 = tpu.matmul %247, %232, %cst_46 {dimension_numbers = #tpu.dot_dimension_numbers<[1], [0], [0], [1], [0, 0, 1, 1], [], []>} : vector<4x4xf32>, vector<4x32xf32>, vector<4x32xf32> -> vector<4x32xf32>
    %c0_47 = arith.constant 0 : index
    %c0_48 = arith.constant 0 : index
    %249 = vector.load %arg4[%c0_47, %c0_48] : memref<4x32xf32, #tpu.memory_space<vmem>>, vector<4x32xf32>
    tpu.vector_store %arg4[%c0_47, %c0_48], %248 {strides = array<i32>} : memref<4x32xf32, #tpu.memory_space<vmem>>, vector<4x32xf32>,
    return
  }
}

</mosaic_0001>

<llo_original>
// kernel: lstm_ha_forward.1
$region0: #{lstm_ha_forward.1}
  #allocation0 [shape = 'u32[]', space=smem, size = 0x4, offset = 0x4, fixed_abs, tag = 'smem constant byte address 0x4 - core index']
  #allocation1 [shape = 'u32[144,128]{1,0:T(1,128)}', space=vmem, size = 0x12000, scoped, tag = 'internal scratch']
  %s0 = inlined_call_operand.vmem [shape: f32[32,8], index: 0, kind: input, shape index: {}]
  %s1 = inlined_call_operand.vmem [shape: f32[8,128], index: 1, kind: input, shape index: {}]
  %s2 = inlined_call_operand.vmem [shape: f32[32,128], index: 2, kind: input, shape index: {}]
  %s3 = inlined_call_operand.vmem [shape: f32[1,128], index: 3, kind: input, shape index: {}]
  %s4 = inlined_call_operand.hbm [shape: f32[4,32], index: 4, kind: output, shape index: {}]
  %s5 = sld [smem:[#allocation0]]
  $region26: #{lstm_ha_forward.1} parent=0
    _
  %s7 = ssub.s32 1, %s5
  %s8 = scalar_select 0, %s7, %s5
  $region1: #{lstm_ha_forward.1} parent=0
    #allocation2 [shape = 'u8[2048]{0}', space=vmem, size = 0x800, scoped, tag = 'output window, operand 0, single buffered']
    #allocation3 [shape = 's32[1]{0}', space=sflag, size = 0x4, scoped, tag = 'scoped memory for lstm_ha_forward.1']
    %9 = vsyncpa [#allocation3], 0
    // Predicated region
    $region2: #{lstm_ha_forward.1} parent=1 // pred_check
      _
    $region3: #{lstm_ha_forward.1} parent=1 // pred_check_branch
      %11 = sbr.rel (0) target = $region5
    $region4: #{lstm_ha_forward.1} parent=1 // pred_region
      _
    $region5: #{lstm_ha_forward.1} parent=1 // pred_fallthru
      _
    // Predicated region
    $region6: #{lstm_ha_forward.1} parent=1 // pred_check
      _
    $region7: #{lstm_ha_forward.1} parent=1 // pred_check_branch
      %13 = sbr.rel (0) target = $region9
    $region8: #{lstm_ha_forward.1} parent=1 // pred_region
      _
    $region9: #{lstm_ha_forward.1} parent=1 // pred_fallthru
      _
    // Predicated region
    $region10: #{lstm_ha_forward.1} parent=1 // pred_check
      _
    $region11: #{lstm_ha_forward.1} parent=1 // pred_check_branch
      %15 = sbr.rel (0) target = $region13
    $region12: #{lstm_ha_forward.1} parent=1 // pred_region
      _
    $region13: #{lstm_ha_forward.1} parent=1 // pred_fallthru
      _
    // Predicated region
    $region14: #{lstm_ha_forward.1} parent=1 // pred_check
      _
    $region15: #{lstm_ha_forward.1} parent=1 // pred_check_branch
      %17 = sbr.rel (0) target = $region17
    $region16: #{lstm_ha_forward.1} parent=1 // pred_region
      _
    $region17: #{lstm_ha_forward.1} parent=1 // pred_fallthru
      _
    %v18 = vld [vmem:[%s0] sm:$0xff]
    %v19 = vld [vmem:[%s0 + $0x8] sm:$0xff]
    %v20 = vld [vmem:[%s0 + $0x10] sm:$0xff]
    %v21 = vld [vmem:[%s0 + $0x18] sm:$0xff]
    %v22 = vld [vmem:[%s1] sm:$0xff]
    %v23 = vld [vmem:[%s3] sm:$0x1]
    %v25 = vlaneseq
    %v26 = vshrl.u32 %v25, 7
    %v27 = vsub.s32 0, %v26
    %v28 = vrot.slane %v23, %v27
    %vm30 = vcmask 64512
    %v32 = vsel %vm30, %v18, 0
    %v35 = vsel %vm30, %v19, 0
    %v38 = vsel %vm30, %v20, 0
    %v41 = vsel %vm30, %v21, 0
    %43 = vmatprep.subr.mxu0 0.0
    %44 = vmatpush1.msra.mxu0 %v22
    %45 = vmatprep.subr.mxu0 0.0
    %46 = vmatpush1.msra.mxu0 0.0
    %47 = vmatprep.subr.mxu0 0.0
    %48 = vmatpush1.msra.mxu0 0.0
    %49 = vmatprep.subr.mxu0 0.0
    %50 = vmatpush1.msra.mxu0 0.0
    %51 = vmatprep.subr.mxu0 0.0
    %52 = vmatpush1.msra.mxu0 0.0
    %53 = vmatprep.subr.mxu0 0.0
    %54 = vmatpush1.msra.mxu0 0.0
    %55 = vmatprep.subr.mxu0 0.0
    %56 = vmatpush1.msra.mxu0 0.0
    %57 = vmatprep.subr.mxu0 0.0
    %58 = vmatpush1.msra.mxu0 0.0
    %59 = vmatprep.subr.mxu0 0.0
    %60 = vmatpush1.msra.mxu0 0.0
    %61 = vmatprep.subr.mxu0 0.0
    %62 = vmatpush1.msra.mxu0 0.0
    %63 = vmatprep.subr.mxu0 0.0
    %64 = vmatpush1.msra.mxu0 0.0
    %65 = vmatprep.subr.mxu0 0.0
    %66 = vmatpush1.msra.mxu0 0.0
    %67 = vmatprep.subr.mxu0 0.0
    %68 = vmatpush1.msra.mxu0 0.0
    %69 = vmatprep.subr.mxu0 0.0
    %70 = vmatpush1.msra.mxu0 0.0
    %71 = vmatprep.subr.mxu0 0.0
    %72 = vmatpush1.msra.mxu0 0.0
    %73 = vmatprep.subr.mxu0 0.0
    %74 = vmatpush1.msra.mxu0 0.0
    %75 = vmatprep.subr.mxu0 0.0
    %76 = vmatpush1.msra.mxu0 0.0
    %77 = vmatprep.subr.mxu0 0.0
    %78 = vmatpush1.msra.mxu0 0.0
    %79 = vmatprep.subr.mxu0 0.0
    %80 = vmatpush1.msra.mxu0 0.0
    %81 = vmatprep.subr.mxu0 0.0
    %82 = vmatpush1.msra.mxu0 0.0
    %83 = vmatprep.subr.mxu0 0.0
    %84 = vmatpush1.msra.mxu0 0.0
    %85 = vmatprep.subr.mxu0 0.0
    %86 = vmatpush1.msra.mxu0 0.0
    %87 = vmatprep.subr.mxu0 0.0
    %88 = vmatpush1.msra.mxu0 0.0
    %89 = vmatprep.subr.mxu0 0.0
    %90 = vmatpush1.msra.mxu0 0.0
    %91 = vmatprep.subr.mxu0 0.0
    %92 = vmatpush1.msra.mxu0 0.0
    %93 = vmatprep.subr.mxu0 0.0
    %94 = vmatpush1.msra.mxu0 0.0
    %95 = vmatprep.subr.mxu0 0.0
    %96 = vmatpush1.msra.mxu0 0.0
    %97 = vmatprep.subr.mxu0 0.0
    %98 = vmatpush1.msra.mxu0 0.0
    %99 = vmatprep.subr.mxu0 0.0
    %100 = vmatpush1.msra.mxu0 0.0
    %101 = vmatprep.subr.mxu0 0.0
    %102 = vmatpush1.msra.mxu0 0.0
    %103 = vmatprep.subr.mxu0 0.0
    %104 = vmatpush1.msra.mxu0 0.0
    %105 = vmatprep.subr.mxu0 0.0
    %106 = vmatpush1.msra.mxu0 0.0
    %107 = vmatprep.mubr.f32.mxu0 0.0
    %108 = vmatmul.mubr.f32.gmra.mrb[0].mxu0 %v32
    %v109 = vpop.f32.mrb[0].mxu0
    %v110 = vadd.f32 %v28, %v109
    %v111 = vpop.f32.mrb[0].mxu0
    %112 = vmatprep.mubr.f32.mxu0 0.0
    %113 = vmatmul.mubr.f32.gmra.mrb[0].mxu0 %v35
    %v114 = vpop.f32.mrb[0].mxu0
    %v115 = vadd.f32 %v28, %v114
    %v116 = vpop.f32.mrb[0].mxu0
    %117 = vmatprep.mubr.f32.mxu0 0.0
    %118 = vmatmul.mubr.f32.gmra.mrb[0].mxu0 %v38
    %v119 = vpop.f32.mrb[0].mxu0
    %v120 = vadd.f32 %v28, %v119
    %v121 = vpop.f32.mrb[0].mxu0
    %122 = vmatprep.mubr.f32.mxu0 0.0
    %123 = vmatmul.mubr.f32.gmra.mrb[0].mxu0 %v41
    %v124 = vpop.f32.mrb[0].mxu0
    %v125 = vadd.f32 %v28, %v124
    %v126 = vpop.f32.mrb[0].mxu0
    %127 = vdwg.mxu0
    %v128 = vld [vmem:[%s2] sm:$0xff]
    %v129 = vld [vmem:[%s2 + $0x8] sm:$0xff]
    %v130 = vld [vmem:[%s2 + $0x10] sm:$0xff]
    %v131 = vld [vmem:[%s2 + $0x18] sm:$0xff]
    %vm132 = vcmask 261120
    %v134 = vsel %vm132, 0.0, 0
    %136 = vmatprep.subr.mxu0 0.0
    %137 = vmatpush1.msra.mxu0 %v128
    %138 = vmatprep.subr.mxu0 0.0
    %139 = vmatpush1.msra.mxu0 %v129
    %140 = vmatprep.subr.mxu0 0.0
    %141 = vmatpush1.msra.mxu0 %v130
    %142 = vmatprep.subr.mxu0 0.0
    %143 = vmatpush1.msra.mxu0 %v131
    %144 = vmatprep.subr.mxu0 0.0
    %145 = vmatpush1.msra.mxu0 0.0
    %146 = vmatprep.subr.mxu0 0.0
    %147 = vmatpush1.msra.mxu0 0.0
    %148 = vmatprep.subr.mxu0 0.0
    %149 = vmatpush1.msra.mxu0 0.0
    %150 = vmatprep.subr.mxu0 0.0
    %151 = vmatpush1.msra.mxu0 0.0
    %152 = vmatprep.subr.mxu0 0.0
    %153 = vmatpush1.msra.mxu0 0.0
    %154 = vmatprep.subr.mxu0 0.0
    %155 = vmatpush1.msra.mxu0 0.0
    %156 = vmatprep.subr.mxu0 0.0
    %157 = vmatpush1.msra.mxu0 0.0
    %158 = vmatprep.subr.mxu0 0.0
    %159 = vmatpush1.msra.mxu0 0.0
    %160 = vmatprep.subr.mxu0 0.0
    %161 = vmatpush1.msra.mxu0 0.0
    %162 = vmatprep.subr.mxu0 0.0
    %163 = vmatpush1.msra.mxu0 0.0
    %164 = vmatprep.subr.mxu0 0.0
    %165 = vmatpush1.msra.mxu0 0.0
    %166 = vmatprep.subr.mxu0 0.0
    %167 = vmatpush1.msra.mxu0 0.0
    %168 = vmatprep.subr.mxu0 0.0
    %169 = vmatpush1.msra.mxu0 0.0
    %170 = vmatprep.subr.mxu0 0.0
    %171 = vmatpush1.msra.mxu0 0.0
    %172 = vmatprep.subr.mxu0 0.0
    %173 = vmatpush1.msra.mxu0 0.0
    %174 = vmatprep.subr.mxu0 0.0
    %175 = vmatpush1.msra.mxu0 0.0
    %176 = vmatprep.subr.mxu0 0.0
    %177 = vmatpush1.msra.mxu0 0.0
    %178 = vmatprep.subr.mxu0 0.0
    %179 = vmatpush1.msra.mxu0 0.0
    %180 = vmatprep.subr.mxu0 0.0
    %181 = vmatpush1.msra.mxu0 0.0
    %182 = vmatprep.subr.mxu0 0.0
    %183 = vmatpush1.msra.mxu0 0.0
    %184 = vmatprep.subr.mxu0 0.0
    %185 = vmatpush1.msra.mxu0 0.0
    %186 = vmatprep.subr.mxu0 0.0
    %187 = vmatpush1.msra.mxu0 0.0
    %188 = vmatprep.subr.mxu0 0.0
    %189 = vmatpush1.msra.mxu0 0.0
    %190 = vmatprep.subr.mxu0 0.0
    %191 = vmatpush1.msra.mxu0 0.0
    %192 = vmatprep.subr.mxu0 0.0
    %193 = vmatpush1.msra.mxu0 0.0
    %194 = vmatprep.subr.mxu0 0.0
    %195 = vmatpush1.msra.mxu0 0.0
    %196 = vmatprep.subr.mxu0 0.0
    %197 = vmatpush1.msra.mxu0 0.0
    %198 = vmatprep.subr.mxu0 0.0
    %199 = vmatpush1.msra.mxu0 0.0
    %200 = vmatprep.mubr.f32.mxu0 0.0
    %201 = vmatmul.mubr.f32.gmra.mrb[0].mxu0 %v134
    %v202 = vpop.f32.mrb[0].mxu0
    %v203 = vadd.f32 0.0, %v202
    %v204 = vpop.f32.mrb[0].mxu0
    %205 = vdwg.mxu0
    %v206 = vadd.f32 %v110, %v203
    %v207 = vxor.u32 %v206, 2147483648
    %v208 = vmul.f32 %v207, 1.442695
    %v209 = vpow.pop %v208
    %v210 = vadd.f32 %v209, 1.0
    %v211 = vrcp.pop %v210
    %v212 = vmul.f32 1.0, %v211
    %v213 = vtanh.pop %v206
    %v214 = vmul.f32 %v212, 0.0
    %216 = vrot.lane.b32.xlu0 %v213, 64
    %v217 = vpop.permute.xlu0 %216
    %v219 = vmul.f32 %v212, %v217
    %221 = vrot.lane.b32.xlu0 %v219, 32
    %v222 = vpop.permute.xlu0 %221
    %v224 = vadd.f32 %v214, %v222
    %v225 = vtanh.pop %v224
    %227 = vrot.lane.b32.xlu0 %v225, 64
    %v228 = vpop.permute.xlu0 %227
    %v230 = vmul.f32 %v212, %v228
    %232 = vrot.lane.b32.xlu0 %v230, 32
    %v233 = vpop.permute.xlu0 %232
    %v234 = vsel %vm132, %v233, 0
    %236 = vmatprep.subr.mxu0 0.0
    %237 = vmatpush1.msra.mxu0 %v128
    %238 = vmatprep.subr.mxu0 0.0
    %239 = vmatpush1.msra.mxu0 %v129
    %240 = vmatprep.subr.mxu0 0.0
    %241 = vmatpush1.msra.mxu0 %v130
    %242 = vmatprep.subr.mxu0 0.0
    %243 = vmatpush1.msra.mxu0 %v131
    %244 = vmatprep.subr.mxu0 0.0
    %245 = vmatpush1.msra.mxu0 0.0
    %246 = vmatprep.subr.mxu0 0.0
    %247 = vmatpush1.msra.mxu0 0.0
    %248 = vmatprep.subr.mxu0 0.0
    %249 = vmatpush1.msra.mxu0 0.0
    %250 = vmatprep.subr.mxu0 0.0
    %251 = vmatpush1.msra.mxu0 0.0
    %252 = vmatprep.subr.mxu0 0.0
    %253 = vmatpush1.msra.mxu0 0.0
    %254 = vmatprep.subr.mxu0 0.0
    %255 = vmatpush1.msra.mxu0 0.0
    %256 = vmatprep.subr.mxu0 0.0
    %257 = vmatpush1.msra.mxu0 0.0
    %258 = vmatprep.subr.mxu0 0.0
    %259 = vmatpush1.msra.mxu0 0.0
    %260 = vmatprep.subr.mxu0 0.0
    %261 = vmatpush1.msra.mxu0 0.0
    %262 = vmatprep.subr.mxu0 0.0
    %263 = vmatpush1.msra.mxu0 0.0
    %264 = vmatprep.subr.mxu0 0.0
    %265 = vmatpush1.msra.mxu0 0.0
    %266 = vmatprep.subr.mxu0 0.0
    %267 = vmatpush1.msra.mxu0 0.0
    %268 = vmatprep.subr.mxu0 0.0
    %269 = vmatpush1.msra.mxu0 0.0
    %270 = vmatprep.subr.mxu0 0.0
    %271 = vmatpush1.msra.mxu0 0.0
    %272 = vmatprep.subr.mxu0 0.0
    %273 = vmatpush1.msra.mxu0 0.0
    %274 = vmatprep.subr.mxu0 0.0
    %275 = vmatpush1.msra.mxu0 0.0
    %276 = vmatprep.subr.mxu0 0.0
    %277 = vmatpush1.msra.mxu0 0.0
    %278 = vmatprep.subr.mxu0 0.0
    %279 = vmatpush1.msra.mxu0 0.0
    %280 = vmatprep.subr.mxu0 0.0
    %281 = vmatpush1.msra.mxu0 0.0
    %282 = vmatprep.subr.mxu0 0.0
    %283 = vmatpush1.msra.mxu0 0.0
    %284 = vmatprep.subr.mxu0 0.0
    %285 = vmatpush1.msra.mxu0 0.0
    %286 = vmatprep.subr.mxu0 0.0
    %287 = vmatpush1.msra.mxu0 0.0
    %288 = vmatprep.subr.mxu0 0.0
    %289 = vmatpush1.msra.mxu0 0.0
    %290 = vmatprep.subr.mxu0 0.0
    %291 = vmatpush1.msra.mxu0 0.0
    %292 = vmatprep.subr.mxu0 0.0
    %293 = vmatpush1.msra.mxu0 0.0
    %294 = vmatprep.subr.mxu0 0.0
    %295 = vmatpush1.msra.mxu0 0.0
    %296 = vmatprep.subr.mxu0 0.0
    %297 = vmatpush1.msra.mxu0 0.0
    %298 = vmatprep.subr.mxu0 0.0
    %299 = vmatpush1.msra.mxu0 0.0
    %300 = vmatprep.mubr.f32.mxu0 0.0
    %301 = vmatmul.mubr.f32.gmra.mrb[0].mxu0 %v234
    %v302 = vpop.f32.mrb[0].mxu0
    %v303 = vadd.f32 0.0, %v302
    %v304 = vpop.f32.mrb[0].mxu0
    %305 = vdwg.mxu0
    %v307 = vrot.slane %v303, 4
    %v309 = vadd.f32 %v110, %v307
    %v310 = vxor.u32 %v309, 2147483648
    %v311 = vmul.f32 %v310, 1.442695
    %v312 = vpow.pop %v311
    %v313 = vadd.f32 %v312, 1.0
    %v314 = vrcp.pop %v313
    %v315 = vmul.f32 1.0, %v314
    %v316 = vtanh.pop %v309
    %v318 = vrot.slane %v224, 4
    %v320 = vmul.f32 %v315, %v318
    %322 = vrot.lane.b32.xlu0 %v316, 64
    %v323 = vpop.permute.xlu0 %322
    %v325 = vmul.f32 %v315, %v323
    %327 = vrot.lane.b32.xlu0 %v325, 32
    %v328 = vpop.permute.xlu0 %327
    %v330 = vadd.f32 %v320, %v328
    %v331 = vtanh.pop %v330
    %333 = vrot.lane.b32.xlu0 %v331, 64
    %v334 = vpop.permute.xlu0 %333
    %v336 = vmul.f32 %v315, %v334
    %v338 = vrot.slane %v336, 4
    %339 = vrot.lane.b32.xlu0 %v338, 32
    %v340 = vpop.permute.xlu0 %339
    %v341 = vsel %vm132, %v340, 0
    %343 = vmatprep.subr.mxu0 0.0
    %344 = vmatpush1.msra.mxu0 %v128
    %345 = vmatprep.subr.mxu0 0.0
    %346 = vmatpush1.msra.mxu0 %v129
    %347 = vmatprep.subr.mxu0 0.0
    %348 = vmatpush1.msra.mxu0 %v130
    %349 = vmatprep.subr.mxu0 0.0
    %350 = vmatpush1.msra.mxu0 %v131
    %351 = vmatprep.subr.mxu0 0.0
    %352 = vmatpush1.msra.mxu0 0.0
    %353 = vmatprep.subr.mxu0 0.0
    %354 = vmatpush1.msra.mxu0 0.0
    %355 = vmatprep.subr.mxu0 0.0
    %356 = vmatpush1.msra.mxu0 0.0
    %357 = vmatprep.subr.mxu0 0.0
    %358 = vmatpush1.msra.mxu0 0.0
    %359 = vmatprep.subr.mxu0 0.0
    %360 = vmatpush1.msra.mxu0 0.0
    %361 = vmatprep.subr.mxu0 0.0
    %362 = vmatpush1.msra.mxu0 0.0
    %363 = vmatprep.subr.mxu0 0.0
    %364 = vmatpush1.msra.mxu0 0.0
    %365 = vmatprep.subr.mxu0 0.0
    %366 = vmatpush1.msra.mxu0 0.0
    %367 = vmatprep.subr.mxu0 0.0
    %368 = vmatpush1.msra.mxu0 0.0
    %369 = vmatprep.subr.mxu0 0.0
    %370 = vmatpush1.msra.mxu0 0.0
    %371 = vmatprep.subr.mxu0 0.0
    %372 = vmatpush1.msra.mxu0 0.0
    %373 = vmatprep.subr.mxu0 0.0
    %374 = vmatpush1.msra.mxu0 0.0
    %375 = vmatprep.subr.mxu0 0.0
    %376 = vmatpush1.msra.mxu0 0.0
    %377 = vmatprep.subr.mxu0 0.0
    %378 = vmatpush1.msra.mxu0 0.0
    %379 = vmatprep.subr.mxu0 0.0
    %380 = vmatpush1.msra.mxu0 0.0
    %381 = vmatprep.subr.mxu0 0.0
    %382 = vmatpush1.msra.mxu0 0.0
    %383 = vmatprep.subr.mxu0 0.0
    %384 = vmatpush1.msra.mxu0 0.0
    %385 = vmatprep.subr.mxu0 0.0
    %386 = vmatpush1.msra.mxu0 0.0
    %387 = vmatprep.subr.mxu0 0.0
    %388 = vmatpush1.msra.mxu0 0.0
    %389 = vmatprep.subr.mxu0 0.0
    %390 = vmatpush1.msra.mxu0 0.0
    %391 = vmatprep.subr.mxu0 0.0
    %392 = vmatpush1.msra.mxu0 0.0
    %393 = vmatprep.subr.mxu0 0.0
    %394 = vmatpush1.msra.mxu0 0.0
    %395 = vmatprep.subr.mxu0 0.0
    %396 = vmatpush1.msra.mxu0 0.0
    %397 = vmatprep.subr.mxu0 0.0
    %398 = vmatpush1.msra.mxu0 0.0
    %399 = vmatprep.subr.mxu0 0.0
    %400 = vmatpush1.msra.mxu0 0.0
    %401 = vmatprep.subr.mxu0 0.0
    %402 = vmatpush1.msra.mxu0 0.0
    %403 = vmatprep.subr.mxu0 0.0
    %404 = vmatpush1.msra.mxu0 0.0
    %405 = vmatprep.subr.mxu0 0.0
    %406 = vmatpush1.msra.mxu0 0.0
    %407 = vmatprep.mubr.f32.mxu0 0.0
    %408 = vmatmul.mubr.f32.gmra.mrb[0].mxu0 %v341
    %v409 = vpop.f32.mrb[0].mxu0
    %v410 = vadd.f32 0.0, %v409
    %v411 = vpop.f32.mrb[0].mxu0
    %412 = vdwg.mxu0
    %v413 = vadd.f32 %v115, %v410
    %v414 = vxor.u32 %v413, 2147483648
    %v415 = vmul.f32 %v414, 1.442695
    %v416 = vpow.pop %v415
    %v417 = vadd.f32 %v416, 1.0
    %v418 = vrcp.pop %v417
    %v419 = vmul.f32 1.0, %v418
    %v420 = vtanh.pop %v413
    %v422 = vrot.slane %v330, 4
    %v424 = vmul.f32 %v419, %v422
    %426 = vrot.lane.b32.xlu0 %v420, 64
    %v427 = vpop.permute.xlu0 %426
    %v429 = vmul.f32 %v419, %v427
    %431 = vrot.lane.b32.xlu0 %v429, 32
    %v432 = vpop.permute.xlu0 %431
    %v434 = vadd.f32 %v424, %v432
    %v435 = vtanh.pop %v434
    %437 = vrot.lane.b32.xlu0 %v435, 64
    %v438 = vpop.permute.xlu0 %437
    %v440 = vmul.f32 %v419, %v438
    %442 = vrot.lane.b32.xlu0 %v440, 32
    %v443 = vpop.permute.xlu0 %442
    %v444 = vsel %vm132, %v443, 0
    %446 = vmatprep.subr.mxu0 0.0
    %447 = vmatpush1.msra.mxu0 %v128
    %448 = vmatprep.subr.mxu0 0.0
    %449 = vmatpush1.msra.mxu0 %v129
    %450 = vmatprep.subr.mxu0 0.0
    %451 = vmatpush1.msra.mxu0 %v130
    %452 = vmatprep.subr.mxu0 0.0
    %453 = vmatpush1.msra.mxu0 %v131
    %454 = vmatprep.subr.mxu0 0.0
    %455 = vmatpush1.msra.mxu0 0.0
    %456 = vmatprep.subr.mxu0 0.0
    %457 = vmatpush1.msra.mxu0 0.0
    %458 = vmatprep.subr.mxu0 0.0
    %459 = vmatpush1.msra.mxu0 0.0
    %460 = vmatprep.subr.mxu0 0.0
    %461 = vmatpush1.msra.mxu0 0.0
    %462 = vmatprep.subr.mxu0 0.0
    %463 = vmatpush1.msra.mxu0 0.0
    %464 = vmatprep.subr.mxu0 0.0
    %465 = vmatpush1.msra.mxu0 0.0
    %466 = vmatprep.subr.mxu0 0.0
    %467 = vmatpush1.msra.mxu0 0.0
    %468 = vmatprep.subr.mxu0 0.0
    %469 = vmatpush1.msra.mxu0 0.0
    %470 = vmatprep.subr.mxu0 0.0
    %471 = vmatpush1.msra.mxu0 0.0
    %472 = vmatprep.subr.mxu0 0.0
    %473 = vmatpush1.msra.mxu0 0.0
    %474 = vmatprep.subr.mxu0 0.0
    %475 = vmatpush1.msra.mxu0 0.0
    %476 = vmatprep.subr.mxu0 0.0
    %477 = vmatpush1.msra.mxu0 0.0
    %478 = vmatprep.subr.mxu0 0.0
    %479 = vmatpush1.msra.mxu0 0.0
    %480 = vmatprep.subr.mxu0 0.0
    %481 = vmatpush1.msra.mxu0 0.0
    %482 = vmatprep.subr.mxu0 0.0
    %483 = vmatpush1.msra.mxu0 0.0
    %484 = vmatprep.subr.mxu0 0.0
    %485 = vmatpush1.msra.mxu0 0.0
    %486 = vmatprep.subr.mxu0 0.0
    %487 = vmatpush1.msra.mxu0 0.0
    %488 = vmatprep.subr.mxu0 0.0
    %489 = vmatpush1.msra.mxu0 0.0
    %490 = vmatprep.subr.mxu0 0.0
    %491 = vmatpush1.msra.mxu0 0.0
    %492 = vmatprep.subr.mxu0 0.0
    %493 = vmatpush1.msra.mxu0 0.0
    %494 = vmatprep.subr.mxu0 0.0
    %495 = vmatpush1.msra.mxu0 0.0
    %496 = vmatprep.subr.mxu0 0.0
    %497 = vmatpush1.msra.mxu0 0.0
    %498 = vmatprep.subr.mxu0 0.0
    %499 = vmatpush1.msra.mxu0 0.0
    %500 = vmatprep.subr.mxu0 0.0
    %501 = vmatpush1.msra.mxu0 0.0
    %502 = vmatprep.subr.mxu0 0.0
    %503 = vmatpush1.msra.mxu0 0.0
    %504 = vmatprep.subr.mxu0 0.0
    %505 = vmatpush1.msra.mxu0 0.0
    %506 = vmatprep.subr.mxu0 0.0
    %507 = vmatpush1.msra.mxu0 0.0
    %508 = vmatprep.subr.mxu0 0.0
    %509 = vmatpush1.msra.mxu0 0.0
    %510 = vmatprep.mubr.f32.mxu0 0.0
    %511 = vmatmul.mubr.f32.gmra.mrb[0].mxu0 %v444
    %v512 = vpop.f32.mrb[0].mxu0
    %v513 = vadd.f32 0.0, %v512
    %v514 = vpop.f32.mrb[0].mxu0
    %515 = vdwg.mxu0
    %v517 = vrot.slane %v513, 4
    %v519 = vadd.f32 %v115, %v517
    %v520 = vxor.u32 %v519, 2147483648
    %v521 = vmul.f32 %v520, 1.442695
    %v522 = vpow.pop %v521
    %v523 = vadd.f32 %v522, 1.0
    %v524 = vrcp.pop %v523
    %v525 = vmul.f32 1.0, %v524
    %v526 = vtanh.pop %v519
    %v528 = vrot.slane %v434, 4
    %v530 = vmul.f32 %v525, %v528
    %532 = vrot.lane.b32.xlu0 %v526, 64
    %v533 = vpop.permute.xlu0 %532
    %v535 = vmul.f32 %v525, %v533
    %537 = vrot.lane.b32.xlu0 %v535, 32
    %v538 = vpop.permute.xlu0 %537
    %v540 = vadd.f32 %v530, %v538
    %v541 = vtanh.pop %v540
    %543 = vrot.lane.b32.xlu0 %v541, 64
    %v544 = vpop.permute.xlu0 %543
    %v546 = vmul.f32 %v525, %v544
    %v548 = vrot.slane %v546, 4
    %549 = vrot.lane.b32.xlu0 %v548, 32
    %v550 = vpop.permute.xlu0 %549
    %v551 = vsel %vm132, %v550, 0
    %553 = vmatprep.subr.mxu0 0.0
    %554 = vmatpush1.msra.mxu0 %v128
    %555 = vmatprep.subr.mxu0 0.0
    %556 = vmatpush1.msra.mxu0 %v129
    %557 = vmatprep.subr.mxu0 0.0
    %558 = vmatpush1.msra.mxu0 %v130
    %559 = vmatprep.subr.mxu0 0.0
    %560 = vmatpush1.msra.mxu0 %v131
    %561 = vmatprep.subr.mxu0 0.0
    %562 = vmatpush1.msra.mxu0 0.0
    %563 = vmatprep.subr.mxu0 0.0
    %564 = vmatpush1.msra.mxu0 0.0
    %565 = vmatprep.subr.mxu0 0.0
    %566 = vmatpush1.msra.mxu0 0.0
    %567 = vmatprep.subr.mxu0 0.0
    %568 = vmatpush1.msra.mxu0 0.0
    %569 = vmatprep.subr.mxu0 0.0
    %570 = vmatpush1.msra.mxu0 0.0
    %571 = vmatprep.subr.mxu0 0.0
    %572 = vmatpush1.msra.mxu0 0.0
    %573 = vmatprep.subr.mxu0 0.0
    %574 = vmatpush1.msra.mxu0 0.0
    %575 = vmatprep.subr.mxu0 0.0
    %576 = vmatpush1.msra.mxu0 0.0
    %577 = vmatprep.subr.mxu0 0.0
    %578 = vmatpush1.msra.mxu0 0.0
    %579 = vmatprep.subr.mxu0 0.0
    %580 = vmatpush1.msra.mxu0 0.0
    %581 = vmatprep.subr.mxu0 0.0
    %582 = vmatpush1.msra.mxu0 0.0
    %583 = vmatprep.subr.mxu0 0.0
    %584 = vmatpush1.msra.mxu0 0.0
    %585 = vmatprep.subr.mxu0 0.0
    %586 = vmatpush1.msra.mxu0 0.0
    %587 = vmatprep.subr.mxu0 0.0
    %588 = vmatpush1.msra.mxu0 0.0
    %589 = vmatprep.subr.mxu0 0.0
    %590 = vmatpush1.msra.mxu0 0.0
    %591 = vmatprep.subr.mxu0 0.0
    %592 = vmatpush1.msra.mxu0 0.0
    %593 = vmatprep.subr.mxu0 0.0
    %594 = vmatpush1.msra.mxu0 0.0
    %595 = vmatprep.subr.mxu0 0.0
    %596 = vmatpush1.msra.mxu0 0.0
    %597 = vmatprep.subr.mxu0 0.0
    %598 = vmatpush1.msra.mxu0 0.0
    %599 = vmatprep.subr.mxu0 0.0
    %600 = vmatpush1.msra.mxu0 0.0
    %601 = vmatprep.subr.mxu0 0.0
    %602 = vmatpush1.msra.mxu0 0.0
    %603 = vmatprep.subr.mxu0 0.0
    %604 = vmatpush1.msra.mxu0 0.0
    %605 = vmatprep.subr.mxu0 0.0
    %606 = vmatpush1.msra.mxu0 0.0
    %607 = vmatprep.subr.mxu0 0.0
    %608 = vmatpush1.msra.mxu0 0.0
    %609 = vmatprep.subr.mxu0 0.0
    %610 = vmatpush1.msra.mxu0 0.0
    %611 = vmatprep.subr.mxu0 0.0
    %612 = vmatpush1.msra.mxu0 0.0
    %613 = vmatprep.subr.mxu0 0.0
    %614 = vmatpush1.msra.mxu0 0.0
    %615 = vmatprep.subr.mxu0 0.0
    %616 = vmatpush1.msra.mxu0 0.0
    %617 = vmatprep.mubr.f32.mxu0 0.0
    %618 = vmatmul.mubr.f32.gmra.mrb[0].mxu0 %v551
    %v619 = vpop.f32.mrb[0].mxu0
    %v620 = vadd.f32 0.0, %v619
    %v621 = vpop.f32.mrb[0].mxu0
    %622 = vdwg.mxu0
    %v623 = vadd.f32 %v120, %v620
    %v624 = vxor.u32 %v623, 2147483648
    %v625 = vmul.f32 %v624, 1.442695
    %v626 = vpow.pop %v625
    %v627 = vadd.f32 %v626, 1.0
    %v628 = vrcp.pop %v627
    %v629 = vmul.f32 1.0, %v628
    %v630 = vtanh.pop %v623
    %v632 = vrot.slane %v540, 4
    %v634 = vmul.f32 %v629, %v632
    %636 = vrot.lane.b32.xlu0 %v630, 64
    %v637 = vpop.permute.xlu0 %636
    %v639 = vmul.f32 %v629, %v637
    %641 = vrot.lane.b32.xlu0 %v639, 32
    %v642 = vpop.permute.xlu0 %641
    %v644 = vadd.f32 %v634, %v642
    %v645 = vtanh.pop %v644
    %647 = vrot.lane.b32.xlu0 %v645, 64
    %v648 = vpop.permute.xlu0 %647
    %v650 = vmul.f32 %v629, %v648
    %652 = vrot.lane.b32.xlu0 %v650, 32
    %v653 = vpop.permute.xlu0 %652
    %v654 = vsel %vm132, %v653, 0
    %656 = vmatprep.subr.mxu0 0.0
    %657 = vmatpush1.msra.mxu0 %v128
    %658 = vmatprep.subr.mxu0 0.0
    %659 = vmatpush1.msra.mxu0 %v129
    %660 = vmatprep.subr.mxu0 0.0
    %661 = vmatpush1.msra.mxu0 %v130
    %662 = vmatprep.subr.mxu0 0.0
    %663 = vmatpush1.msra.mxu0 %v131
    %664 = vmatprep.subr.mxu0 0.0
    %665 = vmatpush1.msra.mxu0 0.0
    %666 = vmatprep.subr.mxu0 0.0
    %667 = vmatpush1.msra.mxu0 0.0
    %668 = vmatprep.subr.mxu0 0.0
    %669 = vmatpush1.msra.mxu0 0.0
    %670 = vmatprep.subr.mxu0 0.0
    %671 = vmatpush1.msra.mxu0 0.0
    %672 = vmatprep.subr.mxu0 0.0
    %673 = vmatpush1.msra.mxu0 0.0
    %674 = vmatprep.subr.mxu0 0.0
    %675 = vmatpush1.msra.mxu0 0.0
    %676 = vmatprep.subr.mxu0 0.0
    %677 = vmatpush1.msra.mxu0 0.0
    %678 = vmatprep.subr.mxu0 0.0
    %679 = vmatpush1.msra.mxu0 0.0
    %680 = vmatprep.subr.mxu0 0.0
    %681 = vmatpush1.msra.mxu0 0.0
    %682 = vmatprep.subr.mxu0 0.0
    %683 = vmatpush1.msra.mxu0 0.0
    %684 = vmatprep.subr.mxu0 0.0
    %685 = vmatpush1.msra.mxu0 0.0
    %686 = vmatprep.subr.mxu0 0.0
    %687 = vmatpush1.msra.mxu0 0.0
    %688 = vmatprep.subr.mxu0 0.0
    %689 = vmatpush1.msra.mxu0 0.0
    %690 = vmatprep.subr.mxu0 0.0
    %691 = vmatpush1.msra.mxu0 0.0
    %692 = vmatprep.subr.mxu0 0.0
    %693 = vmatpush1.msra.mxu0 0.0
    %694 = vmatprep.subr.mxu0 0.0
    %695 = vmatpush1.msra.mxu0 0.0
    %696 = vmatprep.subr.mxu0 0.0
    %697 = vmatpush1.msra.mxu0 0.0
    %698 = vmatprep.subr.mxu0 0.0
    %699 = vmatpush1.msra.mxu0 0.0
    %700 = vmatprep.subr.mxu0 0.0
    %701 = vmatpush1.msra.mxu0 0.0
    %702 = vmatprep.subr.mxu0 0.0
    %703 = vmatpush1.msra.mxu0 0.0
    %704 = vmatprep.subr.mxu0 0.0
    %705 = vmatpush1.msra.mxu0 0.0
    %706 = vmatprep.subr.mxu0 0.0
    %707 = vmatpush1.msra.mxu0 0.0
    %708 = vmatprep.subr.mxu0 0.0
    %709 = vmatpush1.msra.mxu0 0.0
    %710 = vmatprep.subr.mxu0 0.0
    %711 = vmatpush1.msra.mxu0 0.0
    %712 = vmatprep.subr.mxu0 0.0
    %713 = vmatpush1.msra.mxu0 0.0
    %714 = vmatprep.subr.mxu0 0.0
    %715 = vmatpush1.msra.mxu0 0.0
    %716 = vmatprep.subr.mxu0 0.0
    %717 = vmatpush1.msra.mxu0 0.0
    %718 = vmatprep.subr.mxu0 0.0
    %719 = vmatpush1.msra.mxu0 0.0
    %720 = vmatprep.mubr.f32.mxu0 0.0
    %721 = vmatmul.mubr.f32.gmra.mrb[0].mxu0 %v654
    %v722 = vpop.f32.mrb[0].mxu0
    %v723 = vadd.f32 0.0, %v722
    %v724 = vpop.f32.mrb[0].mxu0
    %725 = vdwg.mxu0
    %v727 = vrot.slane %v723, 4
    %v729 = vadd.f32 %v120, %v727
    %v730 = vxor.u32 %v729, 2147483648
    %v731 = vmul.f32 %v730, 1.442695
    %v732 = vpow.pop %v731
    %v733 = vadd.f32 %v732, 1.0
    %v734 = vrcp.pop %v733
    %v735 = vmul.f32 1.0, %v734
    %v736 = vtanh.pop %v729
    %v738 = vrot.slane %v644, 4
    %v740 = vmul.f32 %v735, %v738
    %742 = vrot.lane.b32.xlu0 %v736, 64
    %v743 = vpop.permute.xlu0 %742
    %v745 = vmul.f32 %v735, %v743
    %747 = vrot.lane.b32.xlu0 %v745, 32
    %v748 = vpop.permute.xlu0 %747
    %v750 = vadd.f32 %v740, %v748
    %v751 = vtanh.pop %v750
    %753 = vrot.lane.b32.xlu0 %v751, 64
    %v754 = vpop.permute.xlu0 %753
    %v756 = vmul.f32 %v735, %v754
    %v758 = vrot.slane %v756, 4
    %759 = vrot.lane.b32.xlu0 %v758, 32
    %v760 = vpop.permute.xlu0 %759
    %v761 = vsel %vm132, %v760, 0
    %763 = vmatprep.subr.mxu0 0.0
    %764 = vmatpush1.msra.mxu0 %v128
    %765 = vmatprep.subr.mxu0 0.0
    %766 = vmatpush1.msra.mxu0 %v129
    %767 = vmatprep.subr.mxu0 0.0
    %768 = vmatpush1.msra.mxu0 %v130
    %769 = vmatprep.subr.mxu0 0.0
    %770 = vmatpush1.msra.mxu0 %v131
    %771 = vmatprep.subr.mxu0 0.0
    %772 = vmatpush1.msra.mxu0 0.0
    %773 = vmatprep.subr.mxu0 0.0
    %774 = vmatpush1.msra.mxu0 0.0
    %775 = vmatprep.subr.mxu0 0.0
    %776 = vmatpush1.msra.mxu0 0.0
    %777 = vmatprep.subr.mxu0 0.0
    %778 = vmatpush1.msra.mxu0 0.0
    %779 = vmatprep.subr.mxu0 0.0
    %780 = vmatpush1.msra.mxu0 0.0
    %781 = vmatprep.subr.mxu0 0.0
    %782 = vmatpush1.msra.mxu0 0.0
    %783 = vmatprep.subr.mxu0 0.0
    %784 = vmatpush1.msra.mxu0 0.0
    %785 = vmatprep.subr.mxu0 0.0
    %786 = vmatpush1.msra.mxu0 0.0
    %787 = vmatprep.subr.mxu0 0.0
    %788 = vmatpush1.msra.mxu0 0.0
    %789 = vmatprep.subr.mxu0 0.0
    %790 = vmatpush1.msra.mxu0 0.0
    %791 = vmatprep.subr.mxu0 0.0
    %792 = vmatpush1.msra.mxu0 0.0
    %793 = vmatprep.subr.mxu0 0.0
    %794 = vmatpush1.msra.mxu0 0.0
    %795 = vmatprep.subr.mxu0 0.0
    %796 = vmatpush1.msra.mxu0 0.0
    %797 = vmatprep.subr.mxu0 0.0
    %798 = vmatpush1.msra.mxu0 0.0
    %799 = vmatprep.subr.mxu0 0.0
    %800 = vmatpush1.msra.mxu0 0.0
    %801 = vmatprep.subr.mxu0 0.0
    %802 = vmatpush1.msra.mxu0 0.0
    %803 = vmatprep.subr.mxu0 0.0
    %804 = vmatpush1.msra.mxu0 0.0
    %805 = vmatprep.subr.mxu0 0.0
    %806 = vmatpush1.msra.mxu0 0.0
    %807 = vmatprep.subr.mxu0 0.0
    %808 = vmatpush1.msra.mxu0 0.0
    %809 = vmatprep.subr.mxu0 0.0
    %810 = vmatpush1.msra.mxu0 0.0
    %811 = vmatprep.subr.mxu0 0.0
    %812 = vmatpush1.msra.mxu0 0.0
    %813 = vmatprep.subr.mxu0 0.0
    %814 = vmatpush1.msra.mxu0 0.0
    %815 = vmatprep.subr.mxu0 0.0
    %816 = vmatpush1.msra.mxu0 0.0
    %817 = vmatprep.subr.mxu0 0.0
    %818 = vmatpush1.msra.mxu0 0.0
    %819 = vmatprep.subr.mxu0 0.0
    %820 = vmatpush1.msra.mxu0 0.0
    %821 = vmatprep.subr.mxu0 0.0
    %822 = vmatpush1.msra.mxu0 0.0
    %823 = vmatprep.subr.mxu0 0.0
    %824 = vmatpush1.msra.mxu0 0.0
    %825 = vmatprep.subr.mxu0 0.0
    %826 = vmatpush1.msra.mxu0 0.0
    %827 = vmatprep.mubr.f32.mxu0 0.0
    %828 = vmatmul.mubr.f32.gmra.mrb[0].mxu0 %v761
    %v829 = vpop.f32.mrb[0].mxu0
    %v830 = vadd.f32 0.0, %v829
    %v831 = vpop.f32.mrb[0].mxu0
    %832 = vdwg.mxu0
    %v833 = vadd.f32 %v125, %v830
    %v834 = vxor.u32 %v833, 2147483648
    %v835 = vmul.f32 %v834, 1.442695
    %v836 = vpow.pop %v835
    %v837 = vadd.f32 %v836, 1.0
    %v838 = vrcp.pop %v837
    %v839 = vmul.f32 1.0, %v838
    %v840 = vtanh.pop %v833
    %v842 = vrot.slane %v750, 4
    %v844 = vmul.f32 %v839, %v842
    %846 = vrot.lane.b32.xlu0 %v840, 64
    %v847 = vpop.permute.xlu0 %846
    %v849 = vmul.f32 %v839, %v847
    %851 = vrot.lane.b32.xlu0 %v849, 32
    %v852 = vpop.permute.xlu0 %851
    %v854 = vadd.f32 %v844, %v852
    %v855 = vtanh.pop %v854
    %857 = vrot.lane.b32.xlu0 %v855, 64
    %v858 = vpop.permute.xlu0 %857
    %v860 = vmul.f32 %v839, %v858
    %862 = vrot.lane.b32.xlu0 %v860, 32
    %v863 = vpop.permute.xlu0 %862
    %v864 = vsel %vm132, %v863, 0
    %866 = vmatprep.subr.mxu0 0.0
    %867 = vmatpush1.msra.mxu0 %v128
    %868 = vmatprep.subr.mxu0 0.0
    %869 = vmatpush1.msra.mxu0 %v129
    %870 = vmatprep.subr.mxu0 0.0
    %871 = vmatpush1.msra.mxu0 %v130
    %872 = vmatprep.subr.mxu0 0.0
    %873 = vmatpush1.msra.mxu0 %v131
    %874 = vmatprep.subr.mxu0 0.0
    %875 = vmatpush1.msra.mxu0 0.0
    %876 = vmatprep.subr.mxu0 0.0
    %877 = vmatpush1.msra.mxu0 0.0
    %878 = vmatprep.subr.mxu0 0.0
    %879 = vmatpush1.msra.mxu0 0.0
    %880 = vmatprep.subr.mxu0 0.0
    %881 = vmatpush1.msra.mxu0 0.0
    %882 = vmatprep.subr.mxu0 0.0
    %883 = vmatpush1.msra.mxu0 0.0
    %884 = vmatprep.subr.mxu0 0.0
    %885 = vmatpush1.msra.mxu0 0.0
    %886 = vmatprep.subr.mxu0 0.0
    %887 = vmatpush1.msra.mxu0 0.0
    %888 = vmatprep.subr.mxu0 0.0
    %889 = vmatpush1.msra.mxu0 0.0
    %890 = vmatprep.subr.mxu0 0.0
    %891 = vmatpush1.msra.mxu0 0.0
    %892 = vmatprep.subr.mxu0 0.0
    %893 = vmatpush1.msra.mxu0 0.0
    %894 = vmatprep.subr.mxu0 0.0
    %895 = vmatpush1.msra.mxu0 0.0
    %896 = vmatprep.subr.mxu0 0.0
    %897 = vmatpush1.msra.mxu0 0.0
    %898 = vmatprep.subr.mxu0 0.0
    %899 = vmatpush1.msra.mxu0 0.0
    %900 = vmatprep.subr.mxu0 0.0
    %901 = vmatpush1.msra.mxu0 0.0
    %902 = vmatprep.subr.mxu0 0.0
    %903 = vmatpush1.msra.mxu0 0.0
    %904 = vmatprep.subr.mxu0 0.0
    %905 = vmatpush1.msra.mxu0 0.0
    %906 = vmatprep.subr.mxu0 0.0
    %907 = vmatpush1.msra.mxu0 0.0
    %908 = vmatprep.subr.mxu0 0.0
    %909 = vmatpush1.msra.mxu0 0.0
    %910 = vmatprep.subr.mxu0 0.0
    %911 = vmatpush1.msra.mxu0 0.0
    %912 = vmatprep.subr.mxu0 0.0
    %913 = vmatpush1.msra.mxu0 0.0
    %914 = vmatprep.subr.mxu0 0.0
    %915 = vmatpush1.msra.mxu0 0.0
    %916 = vmatprep.subr.mxu0 0.0
    %917 = vmatpush1.msra.mxu0 0.0
    %918 = vmatprep.subr.mxu0 0.0
    %919 = vmatpush1.msra.mxu0 0.0
    %920 = vmatprep.subr.mxu0 0.0
    %921 = vmatpush1.msra.mxu0 0.0
    %922 = vmatprep.subr.mxu0 0.0
    %923 = vmatpush1.msra.mxu0 0.0
    %924 = vmatprep.subr.mxu0 0.0
    %925 = vmatpush1.msra.mxu0 0.0
    %926 = vmatprep.subr.mxu0 0.0
    %927 = vmatpush1.msra.mxu0 0.0
    %928 = vmatprep.subr.mxu0 0.0
    %929 = vmatpush1.msra.mxu0 0.0
    %930 = vmatprep.mubr.f32.mxu0 0.0
    %931 = vmatmul.mubr.f32.gmra.mrb[0].mxu0 %v864
    %v932 = vpop.f32.mrb[0].mxu0
    %v933 = vadd.f32 0.0, %v932
    %v934 = vpop.f32.mrb[0].mxu0
    %935 = vdwg.mxu0
    %v937 = vrot.slane %v933, 4
    %v939 = vadd.f32 %v125, %v937
    %v940 = vxor.u32 %v939, 2147483648
    %v941 = vmul.f32 %v940, 1.442695
    %v942 = vpow.pop %v941
    %v943 = vadd.f32 %v942, 1.0
    %v944 = vrcp.pop %v943
    %v945 = vmul.f32 1.0, %v944
    %v946 = vtanh.pop %v939
    %v948 = vrot.slane %v854, 4
    %v950 = vmul.f32 %v945, %v948
    %952 = vrot.lane.b32.xlu0 %v946, 64
    %v953 = vpop.permute.xlu0 %952
    %v955 = vmul.f32 %v945, %v953
    %957 = vrot.lane.b32.xlu0 %v955, 32
    %v958 = vpop.permute.xlu0 %957
    %v960 = vadd.f32 %v950, %v958
    %v961 = vtanh.pop %v960
    %963 = vrot.lane.b32.xlu0 %v961, 64
    %v964 = vpop.permute.xlu0 %963
    %v966 = vmul.f32 %v945, %v964
    %v968 = vrot.slane %v966, 4
    %969 = vrot.lane.b32.xlu0 %v968, 32
    %v970 = vpop.permute.xlu0 %969
    %v971 = vsel %vm132, %v970, 0
    %973 = vmatprep.subr.mxu0 0.0
    %974 = vmatpush1.xpose.msra.mxu0 %v971
    %975 = vmatprep.subr.mxu0 0.0
    %976 = vmatpush1.xpose.msra.mxu0 0.0
    %977 = vmatprep.subr.mxu0 0.0
    %978 = vmatpush1.xpose.msra.mxu0 0.0
    %979 = vmatprep.subr.mxu0 0.0
    %980 = vmatpush1.xpose.msra.mxu0 0.0
    %981 = vmatprep.subr.mxu0 0.0
    %982 = vmatpush1.xpose.msra.mxu0 0.0
    %983 = vmatprep.subr.mxu0 0.0
    %984 = vmatpush1.xpose.msra.mxu0 0.0
    %985 = vmatprep.subr.mxu0 0.0
    %986 = vmatpush1.xpose.msra.mxu0 0.0
    %987 = vmatprep.subr.mxu0 0.0
    %988 = vmatpush1.xpose.msra.mxu0 0.0
    %989 = vmatprep.subr.mxu0 0.0
    %990 = vmatpush1.xpose.msra.mxu0 0.0
    %991 = vmatprep.subr.mxu0 0.0
    %992 = vmatpush1.xpose.msra.mxu0 0.0
    %993 = vmatprep.subr.mxu0 0.0
    %994 = vmatpush1.xpose.msra.mxu0 0.0
    %995 = vmatprep.subr.mxu0 0.0
    %996 = vmatpush1.xpose.msra.mxu0 0.0
    %997 = vmatprep.subr.mxu0 0.0
    %998 = vmatpush1.xpose.msra.mxu0 0.0
    %999 = vmatprep.subr.mxu0 0.0
    %1000 = vmatpush1.xpose.msra.mxu0 0.0
    %1001 = vmatprep.subr.mxu0 0.0
    %1002 = vmatpush1.xpose.msra.mxu0 0.0
    %1003 = vmatprep.subr.mxu0 0.0
    %1004 = vmatpush1.xpose.msra.mxu0 0.0
    %1005 = vmatprep.subr.mxu0 0.0
    %1006 = vmatpush1.xpose.msra.mxu0 0.0
    %1007 = vmatprep.subr.mxu0 0.0
    %1008 = vmatpush1.xpose.msra.mxu0 0.0
    %1009 = vmatprep.subr.mxu0 0.0
    %1010 = vmatpush1.xpose.msra.mxu0 0.0
    %1011 = vmatprep.subr.mxu0 0.0
    %1012 = vmatpush1.xpose.msra.mxu0 0.0
    %1013 = vmatprep.subr.mxu0 0.0
    %1014 = vmatpush1.xpose.msra.mxu0 0.0
    %1015 = vmatprep.subr.mxu0 0.0
    %1016 = vmatpush1.xpose.msra.mxu0 0.0
    %1017 = vmatprep.subr.mxu0 0.0
    %1018 = vmatpush1.xpose.msra.mxu0 0.0
    %1019 = vmatprep.subr.mxu0 0.0
    %1020 = vmatpush1.xpose.msra.mxu0 0.0
    %1021 = vmatprep.subr.mxu0 0.0
    %1022 = vmatpush1.xpose.msra.mxu0 0.0
    %1023 = vmatprep.subr.mxu0 0.0
    %1024 = vmatpush1.xpose.msra.mxu0 0.0
    %1025 = vmatprep.subr.mxu0 0.0
    %1026 = vmatpush1.xpose.msra.mxu0 0.0
    %1027 = vmatprep.subr.mxu0 0.0
    %1028 = vmatpush1.xpose.msra.mxu0 0.0
    %1029 = vmatprep.subr.mxu0 0.0
    %1030 = vmatpush1.xpose.msra.mxu0 0.0
    %1031 = vmatprep.subr.mxu0 0.0
    %1032 = vmatpush1.xpose.msra.mxu0 0.0
    %1033 = vmatprep.subr.mxu0 0.0
    %1034 = vmatpush1.xpose.msra.mxu0 0.0
    %1035 = vmatprep.subr.mxu0 0.0
    %1036 = vmatpush1.xpose.msra.mxu0 0.0
    %1037 = vmatprep.mubr.f32.mxu0 0.0
    %1038 = vmatmul.mubr.f32.gmra.mrb[0].mxu0 %v971
    %v1039 = vpop.f32.mrb[0].mxu0
    %v1040 = vadd.f32 0.0, %v1039
    %v1041 = vpop.f32.mrb[0].mxu0
    %1042 = vdwg.mxu0
    %v1043 = vmul.f32 %v1040, 0.17677669
    %vm1044 = vcmask 27648
    %v1045 = vsel %vm1044, %v1043, -inf
    %1046 = vmax.xlane.f32.xlu0 %v1045
    %v1047 = vpop.xlane.xlu0 %1046
    %v1048 = vsub.f32 %v1043, %v1047
    %v1049 = vmul.f32 %v1048, 1.442695
    %v1050 = vpow.pop %v1049
    %v1051 = vsel %vm1044, %v1050, 0.0
    %1052 = vadd.xlane.f32.xlu0 %v1051
    %v1053 = vpop.xlane.xlu0 %1052
    %v1054 = vrcp.pop %v1053
    %v1055 = vmul.f32 %v1050, %v1054
    %vm1056 = vcmask 31744
    %v1058 = vsel %vm1056, %v1055, 0
    %vm1060 = vcmask 1043456
    %v1061 = vsel %vm1060, %v970, 0
    %1063 = vmatprep.subr.mxu0 0.0
    %1064 = vmatpush1.msra.mxu0 %v1061
    %1065 = vmatprep.subr.mxu0 0.0
    %1066 = vmatpush1.msra.mxu0 0.0
    %1067 = vmatprep.subr.mxu0 0.0
    %1068 = vmatpush1.msra.mxu0 0.0
    %1069 = vmatprep.subr.mxu0 0.0
    %1070 = vmatpush1.msra.mxu0 0.0
    %1071 = vmatprep.subr.mxu0 0.0
    %1072 = vmatpush1.msra.mxu0 0.0
    %1073 = vmatprep.subr.mxu0 0.0
    %1074 = vmatpush1.msra.mxu0 0.0
    %1075 = vmatprep.subr.mxu0 0.0
    %1076 = vmatpush1.msra.mxu0 0.0
    %1077 = vmatprep.subr.mxu0 0.0
    %1078 = vmatpush1.msra.mxu0 0.0
    %1079 = vmatprep.subr.mxu0 0.0
    %1080 = vmatpush1.msra.mxu0 0.0
    %1081 = vmatprep.subr.mxu0 0.0
    %1082 = vmatpush1.msra.mxu0 0.0
    %1083 = vmatprep.subr.mxu0 0.0
    %1084 = vmatpush1.msra.mxu0 0.0
    %1085 = vmatprep.subr.mxu0 0.0
    %1086 = vmatpush1.msra.mxu0 0.0
    %1087 = vmatprep.subr.mxu0 0.0
    %1088 = vmatpush1.msra.mxu0 0.0
    %1089 = vmatprep.subr.mxu0 0.0
    %1090 = vmatpush1.msra.mxu0 0.0
    %1091 = vmatprep.subr.mxu0 0.0
    %1092 = vmatpush1.msra.mxu0 0.0
    %1093 = vmatprep.subr.mxu0 0.0
    %1094 = vmatpush1.msra.mxu0 0.0
    %1095 = vmatprep.subr.mxu0 0.0
    %1096 = vmatpush1.msra.mxu0 0.0
    %1097 = vmatprep.subr.mxu0 0.0
    %1098 = vmatpush1.msra.mxu0 0.0
    %1099 = vmatprep.subr.mxu0 0.0
    %1100 = vmatpush1.msra.mxu0 0.0
    %1101 = vmatprep.subr.mxu0 0.0
    %1102 = vmatpush1.msra.mxu0 0.0
    %1103 = vmatprep.subr.mxu0 0.0
    %1104 = vmatpush1.msra.mxu0 0.0
    %1105 = vmatprep.subr.mxu0 0.0
    %1106 = vmatpush1.msra.mxu0 0.0
    %1107 = vmatprep.subr.mxu0 0.0
    %1108 = vmatpush1.msra.mxu0 0.0
    %1109 = vmatprep.subr.mxu0 0.0
    %1110 = vmatpush1.msra.mxu0 0.0
    %1111 = vmatprep.subr.mxu0 0.0
    %1112 = vmatpush1.msra.mxu0 0.0
    %1113 = vmatprep.subr.mxu0 0.0
    %1114 = vmatpush1.msra.mxu0 0.0
    %1115 = vmatprep.subr.mxu0 0.0
    %1116 = vmatpush1.msra.mxu0 0.0
    %1117 = vmatprep.subr.mxu0 0.0
    %1118 = vmatpush1.msra.mxu0 0.0
    %1119 = vmatprep.subr.mxu0 0.0
    %1120 = vmatpush1.msra.mxu0 0.0
    %1121 = vmatprep.subr.mxu0 0.0
    %1122 = vmatpush1.msra.mxu0 0.0
    %1123 = vmatprep.subr.mxu0 0.0
    %1124 = vmatpush1.msra.mxu0 0.0
    %1125 = vmatprep.subr.mxu0 0.0
    %1126 = vmatpush1.msra.mxu0 0.0
    %1127 = vmatprep.mubr.f32.mxu0 0.0
    %1128 = vmatmul.mubr.f32.gmra.mrb[0].mxu0 %v1058
    %v1129 = vpop.f32.mrb[0].mxu0
    %v1130 = vadd.f32 0.0, %v1129
    %v1131 = vpop.f32.mrb[0].mxu0
    %1132 = vdwg.mxu0
    %vm1133 = vcmask 257024
    %1134 = vst.msk [vmem:[#allocation2] sm:$0xf] %vm1133, %v1130
    // Predicated region
    $region18: #{lstm_ha_forward.1} parent=1 // pred_check
      _
    $region19: #{lstm_ha_forward.1} parent=1 // pred_check_branch
      %1136 = sbr.rel (0) target = $region21
    $region20: #{lstm_ha_forward.1} parent=1 // pred_region
      %s1138 = ssub.s32 64, 64
      %1139 = vsyncadd [#allocation3], %s1138
      %s1141 = sshll.u32 [#allocation2], 4
      %s1142 = int_to_ptr.vmem [resolvable:$true] %s1141
      %1144 = dma.vmem_to_hbm [thread:$0]  %s1142, 64, %s4, [#allocation3]
    $region21: #{lstm_ha_forward.1} parent=1 // pred_fallthru
      _
    // Predicated region
    $region22: #{lstm_ha_forward.1} parent=1 // pred_check
      _
    $region23: #{lstm_ha_forward.1} parent=1 // pred_check_branch
      %1146 = sbr.rel (0) target = $region25
    $region24: #{lstm_ha_forward.1} parent=1 // pred_region
      %1147 = dma.done [#allocation3], 64
    $region25: #{lstm_ha_forward.1} parent=1 // pred_fallthru
      _
    %1148 = vsyncpa [#allocation3], 1

</llo_original>
